<compile_context>
chip_gen: v7x
topology: tpu7x:2x2x1
jax: 0.10.0
libtpu: 0.0.40
codegen_flags: <defaults>
</compile_context>

<pallas_src>
import jax
import jax.numpy as jnp
from jax.experimental import pallas as pl
from jax.experimental.pallas import tpu as pltpu

SUBLANE = 8
TM_MAX = 512                      # batch-tile cap (sweep 256/512; cap ~1024 per review)
COMPUTE_DTYPE = jnp.bfloat16      # MXU operand dtype (f32 accumulation everywhere)


def _round_up(n, m):
    return ((n + m - 1) // m) * m


# ---------------------------------------------------------------------------
# Fused kernel: x -> relu(x W0 + b0) -> relu(. W1 + b1) -> ... -> out
# ---------------------------------------------------------------------------
def _make_fused_mlp_kernel(n_layers, compute_dtype):
    def kernel(*refs):
        x_ref = refs[0]
        o_ref = refs[-1]
        params = refs[1:-1]                       # (w0, b0, w1, b1, ...)
        h = x_ref[...]                            # (tm, F0), f32 from HBM
        for i in range(n_layers):
            w = params[2 * i][...]                # (K_i, N_i), compute_dtype
            b = params[2 * i + 1][...]            # (1,  N_i), f32
            # bf16 operands -> MXU, f32 accumulation; bias + ReLU in f32 on VPU.
            h = jnp.dot(h.astype(compute_dtype), w,
                        preferred_element_type=jnp.float32)
            h = jnp.maximum(h + b, 0.0)
        o_ref[...] = h.astype(o_ref.dtype)
    return kernel


def fused_mlp(x, weights, biases, *, tm, compute_dtype):
    """One pallas_call for the whole (unpadded) MLP.

    x:       (M, F0) f32, M % tm == 0
    weights: list of (K_i, N_i) arrays in compute_dtype (K_{i+1} == N_i)
    biases:  list of (1, N_i) f32 arrays
    """
    M, F0 = x.shape
    n_layers = len(weights)
    F_out = weights[-1].shape[1]
    grid = (M // tm,)

    # Activations tile over the batch grid axis; weights/biases are full-array
    # blocks that stay VMEM-resident across grid steps (index_map always (0,0)).
    in_specs = [pl.BlockSpec((tm, F0), lambda i: (i, 0))]
    operands = [x]
    for w, b in zip(weights, biases):
        in_specs.append(pl.BlockSpec(w.shape, lambda i: (0, 0)))
        in_specs.append(pl.BlockSpec(b.shape, lambda i: (0, 0)))
        operands.extend([w, b])

    return pl.pallas_call(
        _make_fused_mlp_kernel(n_layers, compute_dtype),
        out_shape=jax.ShapeDtypeStruct((M, F_out), jnp.float32),
        grid=grid,
        in_specs=in_specs,
        out_specs=pl.BlockSpec((tm, F_out), lambda i: (i, 0)),
        compiler_params=pltpu.CompilerParams(
            dimension_semantics=("parallel",)),   # batch axis -> both TCs on v7x
    )(*operands)


# ---------------------------------------------------------------------------
# Parameter init (nn.Linear-style) and one-time prep (bf16 weight cast)
# ---------------------------------------------------------------------------
def init_params(nodes, key):
    """W_i stored pre-transposed as (in, out); b_i as (1, out); U(-1/sqrt(fan_in), ...)."""
    params = []
    for i in range(len(nodes) - 1):
        fan_in, fan_out = nodes[i], nodes[i + 1]
        key, kw, kb = jax.random.split(key, 3)
        bound = 1.0 / (fan_in ** 0.5)
        w = jax.random.uniform(kw, (fan_in, fan_out), jnp.float32, -bound, bound)
        b = jax.random.uniform(kb, (1, fan_out), jnp.float32, -bound, bound)
        params.append((w, b))
    return params


def prepare_params(params, compute_dtype=COMPUTE_DTYPE):
    """One-time cast of weights to the MXU operand dtype; biases stay f32."""
    weights = [w.astype(compute_dtype) for (w, _) in params]
    biases = [b.astype(jnp.float32) for (_, b) in params]
    return weights, biases


# ---------------------------------------------------------------------------
# Forward (inference path of neuralNet.forward)
# ---------------------------------------------------------------------------
def neural_net_forward(nodes, prepared, x, train=False, compute_dtype=COMPUTE_DTYPE):
    # TODO(synk): Dropout(0.5) in the train=True path is not implemented
    # (inference-only forward, matching model.eval() usage in run/test).
    weights, biases = prepared
    x = x.reshape(-1, nodes[0]).astype(jnp.float32)   # x.view(-1, nodes[0])
    batch = x.shape[0]

    if batch <= TM_MAX:
        # Single batch block: block dims equal the full array dims -> always
        # legal, no padding, no wrapper slice, one dispatch total.
        tm, m = batch, batch
        x_in = x
    else:
        # Large batch: 512-row tiles across a parallel grid; pad batch rows
        # only (feature dims stay unpadded) and slice the rows back off.
        tm = TM_MAX
        m = _round_up(batch, tm)
        x_in = jnp.zeros((m, nodes[0]), jnp.float32).at[:batch].set(x)

    out = fused_mlp(x_in, weights, biases, tm=tm, compute_dtype=compute_dtype)
    return out if m == batch else out[:batch]


if __name__ == "__main__":
    nodes = [32, 64, 48, 16]       # small MLP: 3 Linear+ReLU layers
    batch = 8

    key = jax.random.PRNGKey(0)
    key, kx = jax.random.split(key)
    x = jax.random.normal(kx, (batch, nodes[0]), jnp.float32)

    params = init_params(nodes, key)
    prepared = prepare_params(params, COMPUTE_DTYPE)

    out = neural_net_forward(nodes, prepared, x, train=False)
    out = jax.block_until_ready(out)

    # sanity: shape + non-negativity from final ReLU
    assert out.shape == (batch, nodes[-1])
    assert bool(jnp.all(out >= 0.0))

    # reference 1: mirrors the kernel math (bf16 MXU operands, f32 accum/bias/ReLU)
    ref = x
    for (w, b) in params:
        ref = jnp.maximum(
            jnp.dot(ref.astype(COMPUTE_DTYPE), w.astype(COMPUTE_DTYPE),
                    preferred_element_type=jnp.float32) + b, 0.0)
    assert jnp.allclose(out, ref, atol=1e-4, rtol=1e-4), \
        float(jnp.max(jnp.abs(out - ref)))

    # reference 2: pure-f32 module semantics (loose tol covers bf16 operand rounding)
    ref32 = x
    for (w, b) in params:
        ref32 = jnp.maximum(ref32 @ w + b, 0.0)
    assert jnp.allclose(out, ref32, atol=0.1, rtol=0.1)

    print("KERNEL_OK")
</pallas_src>

<mosaic_0001>
module attributes {stable_mosaic.version = 11 : i64} {
  func.func @kernel(%arg0: i32, %arg1: memref<8x32xf32, #tpu.memory_space<vmem>>, %arg2: memref<32x64xbf16, #tpu.memory_space<vmem>>, %arg3: memref<1x64xf32, #tpu.memory_space<vmem>>, %arg4: memref<64x48xbf16, #tpu.memory_space<vmem>>, %arg5: memref<1x48xf32, #tpu.memory_space<vmem>>, %arg6: memref<48x16xbf16, #tpu.memory_space<vmem>>, %arg7: memref<1x16xf32, #tpu.memory_space<vmem>>, %arg8: memref<8x16xf32, #tpu.memory_space<vmem>>) attributes {dimension_semantics = [#tpu.dimension_semantics<parallel>], iteration_bounds = array<i64: 1>, scalar_prefetch = 0 : i64, scratch_operands = 0 : i64, tpu.core_type = #tpu.core_type<tc>, window_params = [{transform_indices = @transform_0, window_bounds = array<i64: 8, 32>}, {pipeline_mode = #tpu.pipeline_mode<synchronous>, transform_indices = @transform_1, window_bounds = array<i64: 32, 64>}, {pipeline_mode = #tpu.pipeline_mode<synchronous>, transform_indices = @transform_2, window_bounds = array<i64: 1, 64>}, {pipeline_mode = #tpu.pipeline_mode<synchronous>, transform_indices = @transform_3, window_bounds = array<i64: 64, 48>}, {pipeline_mode = #tpu.pipeline_mode<synchronous>, transform_indices = @transform_4, window_bounds = array<i64: 1, 48>}, {pipeline_mode = #tpu.pipeline_mode<synchronous>, transform_indices = @transform_5, window_bounds = array<i64: 48, 16>}, {pipeline_mode = #tpu.pipeline_mode<synchronous>, transform_indices = @transform_6, window_bounds = array<i64: 1, 16>}, {transform_indices = @transform_7, window_bounds = array<i64: 8, 16>}]} {
    %c0 = arith.constant 0 : index
    %c0_0 = arith.constant 0 : index
    %0 = vector.load %arg1[%c0, %c0_0] : memref<8x32xf32, #tpu.memory_space<vmem>>, vector<8x32xf32>
    %c0_1 = arith.constant 0 : index
    %c0_2 = arith.constant 0 : index
    %1 = vector.load %arg2[%c0_1, %c0_2] : memref<32x64xbf16, #tpu.memory_space<vmem>>, vector<32x64xbf16>
    %c0_3 = arith.constant 0 : index
    %c0_4 = arith.constant 0 : index
    %2 = vector.load %arg3[%c0_3, %c0_4] : memref<1x64xf32, #tpu.memory_space<vmem>>, vector<1x64xf32>
    %3 = arith.truncf %0 : vector<8x32xf32> to vector<8x32xbf16>
    %cst = arith.constant dense<0.000000e+00> : vector<8x64xf32>
    %4 = tpu.matmul %3, %1, %cst {dimension_numbers = #tpu.dot_dimension_numbers<[1], [0], [0], [1], [0, 0, 1, 1], [], []>} : vector<8x32xbf16>, vector<32x64xbf16>, vector<8x64xf32> -> vector<8x64xf32>
    %5 = vector.broadcast %2 : vector<1x64xf32> to vector<8x64xf32>
    %6 = arith.addf %4, %5 : vector<8x64xf32>
    %cst_5 = arith.constant 0.000000e+00 : f32
    %7 = vector.broadcast %cst_5 : f32 to vector<8x64xf32>
    %8 = arith.maximumf %6, %7 : vector<8x64xf32>
    %c0_6 = arith.constant 0 : index
    %c0_7 = arith.constant 0 : index
    %9 = vector.load %arg4[%c0_6, %c0_7] : memref<64x48xbf16, #tpu.memory_space<vmem>>, vector<64x48xbf16>
    %c0_8 = arith.constant 0 : index
    %c0_9 = arith.constant 0 : index
    %10 = vector.load %arg5[%c0_8, %c0_9] : memref<1x48xf32, #tpu.memory_space<vmem>>, vector<1x48xf32>
    %11 = arith.truncf %8 : vector<8x64xf32> to vector<8x64xbf16>
    %cst_10 = arith.constant dense<0.000000e+00> : vector<8x48xf32>
    %12 = tpu.matmul %11, %9, %cst_10 {dimension_numbers = #tpu.dot_dimension_numbers<[1], [0], [0], [1], [0, 0, 1, 1], [], []>} : vector<8x64xbf16>, vector<64x48xbf16>, vector<8x48xf32> -> vector<8x48xf32>
    %13 = vector.broadcast %10 : vector<1x48xf32> to vector<8x48xf32>
    %14 = arith.addf %12, %13 : vector<8x48xf32>
    %cst_11 = arith.constant 0.000000e+00 : f32
    %15 = vector.broadcast %cst_11 : f32 to vector<8x48xf32>
    %16 = arith.maximumf %14, %15 : vector<8x48xf32>
    %c0_12 = arith.constant 0 : index
    %c0_13 = arith.constant 0 : index
    %17 = vector.load %arg6[%c0_12, %c0_13] : memref<48x16xbf16, #tpu.memory_space<vmem>>, vector<48x16xbf16>
    %c0_14 = arith.constant 0 : index
    %c0_15 = arith.constant 0 : index
    %18 = vector.load %arg7[%c0_14, %c0_15] : memref<1x16xf32, #tpu.memory_space<vmem>>, vector<1x16xf32>
    %19 = arith.truncf %16 : vector<8x48xf32> to vector<8x48xbf16>
    %cst_16 = arith.constant dense<0.000000e+00> : vector<8x16xf32>
    %20 = tpu.matmul %19, %17, %cst_16 {dimension_numbers = #tpu.dot_dimension_numbers<[1], [0], [0], [1], [0, 0, 1, 1], [], []>} : vector<8x48xbf16>, vector<48x16xbf16>, vector<8x16xf32> -> vector<8x16xf32>
    %21 = vector.broadcast %18 : vector<1x16xf32> to vector<8x16xf32>
    %22 = arith.addf %20, %21 : vector<8x16xf32>
    %cst_17 = arith.constant 0.000000e+00 : f32
    %23 = vector.broadcast %cst_17 : f32 to vector<8x16xf32>
    %24 = arith.maximumf %22, %23 : vector<8x16xf32>
    %c0_18 = arith.constant 0 : index
    %c0_19 = arith.constant 0 : index
    %25 = vector.load %arg8[%c0_18, %c0_19] : memref<8x16xf32, #tpu.memory_space<vmem>>, vector<8x16xf32>
    tpu.vector_store %arg8[%c0_18, %c0_19], %24 {strides = array<i32>} : memref<8x16xf32, #tpu.memory_space<vmem>>, vector<8x16xf32>,
    return
  }
  func.func @transform_0(%arg0: i32) -> (i32, i32) {
    %c0_i32 = arith.constant 0 : i32
    %c0_i32_0 = arith.constant 0 : i32
    return %arg0, %c0_i32 : i32, i32
  }
  func.func @transform_1(%arg0: i32) -> (i32, i32) {
    %c0_i32 = arith.constant 0 : i32
    %c0_i32_0 = arith.constant 0 : i32
    %c0_i32_1 = arith.constant 0 : i32
    return %c0_i32, %c0_i32_0 : i32, i32
  }
  func.func @transform_2(%arg0: i32) -> (i32, i32) {
    %c0_i32 = arith.constant 0 : i32
    %c0_i32_0 = arith.constant 0 : i32
    %c0_i32_1 = arith.constant 0 : i32
    return %c0_i32, %c0_i32_0 : i32, i32
  }
  func.func @transform_3(%arg0: i32) -> (i32, i32) {
    %c0_i32 = arith.constant 0 : i32
    %c0_i32_0 = arith.constant 0 : i32
    %c0_i32_1 = arith.constant 0 : i32
    return %c0_i32, %c0_i32_0 : i32, i32
  }
  func.func @transform_4(%arg0: i32) -> (i32, i32) {
    %c0_i32 = arith.constant 0 : i32
    %c0_i32_0 = arith.constant 0 : i32
    %c0_i32_1 = arith.constant 0 : i32
    return %c0_i32, %c0_i32_0 : i32, i32
  }
  func.func @transform_5(%arg0: i32) -> (i32, i32) {
    %c0_i32 = arith.constant 0 : i32
    %c0_i32_0 = arith.constant 0 : i32
    %c0_i32_1 = arith.constant 0 : i32
    return %c0_i32, %c0_i32_0 : i32, i32
  }
  func.func @transform_6(%arg0: i32) -> (i32, i32) {
    %c0_i32 = arith.constant 0 : i32
    %c0_i32_0 = arith.constant 0 : i32
    %c0_i32_1 = arith.constant 0 : i32
    return %c0_i32, %c0_i32_0 : i32, i32
  }
  func.func @transform_7(%arg0: i32) -> (i32, i32) {
    %c0_i32 = arith.constant 0 : i32
    %c0_i32_0 = arith.constant 0 : i32
    return %arg0, %c0_i32 : i32, i32
  }
}

</mosaic_0001>

<llo_original>
// kernel: tpu_custom_call.1
$region0: #{tpu_custom_call.1}
  #allocation0 [shape = 'u32[]', space=smem, size = 0x4, offset = 0x4, fixed_abs, tag = 'smem constant byte address 0x4 - core index']
  #allocation1 [shape = 'u32[144,128]{1,0:T(1,128)}', space=vmem, size = 0x12000, scoped, tag = 'internal scratch']
  %s0 = inlined_call_operand.vmem [shape: f32[8,32], index: 0, kind: input, shape index: {}]
  %s1 = inlined_call_operand.vmem [shape: bf16[32,64], index: 1, kind: input, shape index: {}]
  %s2 = inlined_call_operand.vmem [shape: f32[1,64], index: 2, kind: input, shape index: {}]
  %s3 = inlined_call_operand.vmem [shape: bf16[64,48], index: 3, kind: input, shape index: {}]
  %s4 = inlined_call_operand.vmem [shape: f32[1,48], index: 4, kind: input, shape index: {}]
  %s5 = inlined_call_operand.vmem [shape: bf16[48,16], index: 5, kind: input, shape index: {}]
  %s6 = inlined_call_operand.vmem [shape: f32[1,16], index: 6, kind: input, shape index: {}]
  %s7 = inlined_call_operand.hbm [shape: f32[8,16], index: 7, kind: output, shape index: {}]
  %s8 = sld [smem:[#allocation0]]
  $region38: #{tpu_custom_call.1} parent=0
    _
  %s10 = ssub.s32 1, %s8
  %s11 = scalar_select 0, %s10, %s8
  $region1: #{tpu_custom_call.1} parent=0
    #allocation2 [shape = 'u8[4096]{0}', space=vmem, size = 0x1000, scoped, tag = 'output window, operand 0, single buffered']
    #allocation3 [shape = 's32[1]{0}', space=sflag, size = 0x4, scoped, tag = 'scoped memory for tpu_custom_call.1']
    %12 = vsyncpa [#allocation3], 0
    // Predicated region
    $region2: #{tpu_custom_call.1} parent=1 // pred_check
      _
    $region3: #{tpu_custom_call.1} parent=1 // pred_check_branch
      %14 = sbr.rel (0) target = $region5
    $region4: #{tpu_custom_call.1} parent=1 // pred_region
      _
    $region5: #{tpu_custom_call.1} parent=1 // pred_fallthru
      _
    // Predicated region
    $region6: #{tpu_custom_call.1} parent=1 // pred_check
      _
    $region7: #{tpu_custom_call.1} parent=1 // pred_check_branch
      %16 = sbr.rel (0) target = $region9
    $region8: #{tpu_custom_call.1} parent=1 // pred_region
      _
    $region9: #{tpu_custom_call.1} parent=1 // pred_fallthru
      _
    // Predicated region
    $region10: #{tpu_custom_call.1} parent=1 // pred_check
      _
    $region11: #{tpu_custom_call.1} parent=1 // pred_check_branch
      %18 = sbr.rel (0) target = $region13
    $region12: #{tpu_custom_call.1} parent=1 // pred_region
      _
    $region13: #{tpu_custom_call.1} parent=1 // pred_fallthru
      _
    // Predicated region
    $region14: #{tpu_custom_call.1} parent=1 // pred_check
      _
    $region15: #{tpu_custom_call.1} parent=1 // pred_check_branch
      %20 = sbr.rel (0) target = $region17
    $region16: #{tpu_custom_call.1} parent=1 // pred_region
      _
    $region17: #{tpu_custom_call.1} parent=1 // pred_fallthru
      _
    // Predicated region
    $region18: #{tpu_custom_call.1} parent=1 // pred_check
      _
    $region19: #{tpu_custom_call.1} parent=1 // pred_check_branch
      %22 = sbr.rel (0) target = $region21
    $region20: #{tpu_custom_call.1} parent=1 // pred_region
      _
    $region21: #{tpu_custom_call.1} parent=1 // pred_fallthru
      _
    // Predicated region
    $region22: #{tpu_custom_call.1} parent=1 // pred_check
      _
    $region23: #{tpu_custom_call.1} parent=1 // pred_check_branch
      %24 = sbr.rel (0) target = $region25
    $region24: #{tpu_custom_call.1} parent=1 // pred_region
      _
    $region25: #{tpu_custom_call.1} parent=1 // pred_fallthru
      _
    // Predicated region
    $region26: #{tpu_custom_call.1} parent=1 // pred_check
      _
    $region27: #{tpu_custom_call.1} parent=1 // pred_check_branch
      %26 = sbr.rel (0) target = $region29
    $region28: #{tpu_custom_call.1} parent=1 // pred_region
      _
    $region29: #{tpu_custom_call.1} parent=1 // pred_fallthru
      _
    %v28 = vld [vmem:[%s0] sm:$0xff]
    %v29 = vld [vmem:[%s1] sm:$0xf]
    %v30 = vld [vmem:[%s1 + $0x4] sm:$0xf]
    %v31 = vld [vmem:[%s1 + $0x8] sm:$0xf]
    %v32 = vld [vmem:[%s1 + $0xc] sm:$0xf]
    %v33 = vld [vmem:[%s2] sm:$0x1]
    %v34 = vpack.c.bf16 %v28, %v28
    %v36 = vlaneseq
    %v37 = vshrl.u32 %v36, 7
    %v38 = vsub.s32 0, %v37
    %v39 = vrot.slane %v33, %v38
    %v45 = vunpack.c.l.b16 %v29
    %v46 = vunpack.c.l.b16 %v30
    %v47 = vunpack.c.l.b16 %v31
    %v48 = vunpack.c.l.b16 %v32
    %v49 = vpack.c.b16 %v46, %v45
    %v50 = vpack.c.b16 %v48, %v47
    %vm53 = vcmask 261120
    %v55 = vsel %vm53, %v34, 0
    %57 = vmatprep.subr.bf16.mxu0 0
    %58 = vmatpush1.bf16.msra.mxu0 %v49
    %59 = vmatprep.subr.bf16.mxu0 0
    %60 = vmatpush1.bf16.msra.mxu0 %v50
    %61 = vmatprep.subr.bf16.mxu0 0
    %62 = vmatpush1.bf16.msra.mxu0 0
    %63 = vmatprep.subr.bf16.mxu0 0
    %64 = vmatpush1.bf16.msra.mxu0 0
    %65 = vmatprep.subr.bf16.mxu0 0
    %66 = vmatpush1.bf16.msra.mxu0 0
    %67 = vmatprep.subr.bf16.mxu0 0
    %68 = vmatpush1.bf16.msra.mxu0 0
    %69 = vmatprep.subr.bf16.mxu0 0
    %70 = vmatpush1.bf16.msra.mxu0 0
    %71 = vmatprep.subr.bf16.mxu0 0
    %72 = vmatpush1.bf16.msra.mxu0 0
    %73 = vmatprep.subr.bf16.mxu0 0
    %74 = vmatpush1.bf16.msra.mxu0 0
    %75 = vmatprep.subr.bf16.mxu0 0
    %76 = vmatpush1.bf16.msra.mxu0 0
    %77 = vmatprep.subr.bf16.mxu0 0
    %78 = vmatpush1.bf16.msra.mxu0 0
    %79 = vmatprep.subr.bf16.mxu0 0
    %80 = vmatpush1.bf16.msra.mxu0 0
    %81 = vmatprep.subr.bf16.mxu0 0
    %82 = vmatpush1.bf16.msra.mxu0 0
    %83 = vmatprep.subr.bf16.mxu0 0
    %84 = vmatpush1.bf16.msra.mxu0 0
    %85 = vmatprep.subr.bf16.mxu0 0
    %86 = vmatpush1.bf16.msra.mxu0 0
    %87 = vmatprep.subr.bf16.mxu0 0
    %88 = vmatpush1.bf16.msra.mxu0 0
    %89 = vmatprep.mubr.bf16.mxu0 0
    %90 = vmatmul.mubr.bf16.gmra.mrb[0].mxu0 %v55
    %v91 = vpop.f32.mrb[0].mxu0
    %v92 = vadd.f32 %v39, %v91
    %v93 = vpop.f32.mrb[0].mxu0
    %v94 = vpop.f32.mrb[0].mxu0
    %v95 = vpop.f32.mrb[0].mxu0
    %96 = vdwg.mxu0
    %v97 = vmax.f32 %v92, 0.0
    %v98 = vld [vmem:[%s3] sm:$0xf]
    %v99 = vld [vmem:[%s3 + $0x4] sm:$0xf]
    %v100 = vld [vmem:[%s3 + $0x8] sm:$0xf]
    %v101 = vld [vmem:[%s3 + $0xc] sm:$0xf]
    %v102 = vld [vmem:[%s3 + $0x10] sm:$0xf]
    %v103 = vld [vmem:[%s3 + $0x14] sm:$0xf]
    %v104 = vld [vmem:[%s3 + $0x18] sm:$0xf]
    %v105 = vld [vmem:[%s3 + $0x1c] sm:$0xf]
    %v106 = vld [vmem:[%s4] sm:$0x1]
    %v107 = vpack.c.bf16 %v97, %v97
    %v109 = vlaneseq
    %v110 = vshrl.u32 %v109, 7
    %v111 = vsub.s32 0, %v110
    %v112 = vrot.slane %v106, %v111
    %v122 = vunpack.c.l.b16 %v98
    %v123 = vunpack.c.l.b16 %v99
    %v124 = vunpack.c.l.b16 %v100
    %v125 = vunpack.c.l.b16 %v101
    %v126 = vunpack.c.l.b16 %v102
    %v127 = vunpack.c.l.b16 %v103
    %v128 = vunpack.c.l.b16 %v104
    %v129 = vunpack.c.l.b16 %v105
    %v130 = vpack.c.b16 %v123, %v122
    %v131 = vpack.c.b16 %v125, %v124
    %v132 = vpack.c.b16 %v127, %v126
    %v133 = vpack.c.b16 %v129, %v128
    %vm138 = vcmask 523264
    %v140 = vsel %vm138, %v107, 0
    %142 = vmatprep.subr.bf16.mxu0 0
    %143 = vmatpush1.bf16.msra.mxu0 %v130
    %144 = vmatprep.subr.bf16.mxu0 0
    %145 = vmatpush1.bf16.msra.mxu0 %v131
    %146 = vmatprep.subr.bf16.mxu0 0
    %147 = vmatpush1.bf16.msra.mxu0 %v132
    %148 = vmatprep.subr.bf16.mxu0 0
    %149 = vmatpush1.bf16.msra.mxu0 %v133
    %150 = vmatprep.subr.bf16.mxu0 0
    %151 = vmatpush1.bf16.msra.mxu0 0
    %152 = vmatprep.subr.bf16.mxu0 0
    %153 = vmatpush1.bf16.msra.mxu0 0
    %154 = vmatprep.subr.bf16.mxu0 0
    %155 = vmatpush1.bf16.msra.mxu0 0
    %156 = vmatprep.subr.bf16.mxu0 0
    %157 = vmatpush1.bf16.msra.mxu0 0
    %158 = vmatprep.subr.bf16.mxu0 0
    %159 = vmatpush1.bf16.msra.mxu0 0
    %160 = vmatprep.subr.bf16.mxu0 0
    %161 = vmatpush1.bf16.msra.mxu0 0
    %162 = vmatprep.subr.bf16.mxu0 0
    %163 = vmatpush1.bf16.msra.mxu0 0
    %164 = vmatprep.subr.bf16.mxu0 0
    %165 = vmatpush1.bf16.msra.mxu0 0
    %166 = vmatprep.subr.bf16.mxu0 0
    %167 = vmatpush1.bf16.msra.mxu0 0
    %168 = vmatprep.subr.bf16.mxu0 0
    %169 = vmatpush1.bf16.msra.mxu0 0
    %170 = vmatprep.subr.bf16.mxu0 0
    %171 = vmatpush1.bf16.msra.mxu0 0
    %172 = vmatprep.subr.bf16.mxu0 0
    %173 = vmatpush1.bf16.msra.mxu0 0
    %174 = vmatprep.mubr.bf16.mxu0 0
    %175 = vmatmul.mubr.bf16.gmra.mrb[0].mxu0 %v140
    %v176 = vpop.f32.mrb[0].mxu0
    %v177 = vadd.f32 %v112, %v176
    %v178 = vpop.f32.mrb[0].mxu0
    %v179 = vpop.f32.mrb[0].mxu0
    %v180 = vpop.f32.mrb[0].mxu0
    %181 = vdwg.mxu0
    %v182 = vmax.f32 %v177, 0.0
    %v183 = vld [vmem:[%s5] sm:$0xf]
    %v184 = vld [vmem:[%s5 + $0x4] sm:$0xf]
    %v185 = vld [vmem:[%s5 + $0x8] sm:$0xf]
    %v186 = vld [vmem:[%s5 + $0xc] sm:$0xf]
    %v187 = vld [vmem:[%s5 + $0x10] sm:$0xf]
    %v188 = vld [vmem:[%s5 + $0x14] sm:$0xf]
    %v189 = vld [vmem:[%s6] sm:$0x1]
    %v190 = vpack.c.bf16 %v182, %v182
    %v192 = vlaneseq
    %v193 = vshrl.u32 %v192, 7
    %v194 = vsub.s32 0, %v193
    %v195 = vrot.slane %v189, %v194
    %v203 = vunpack.c.l.b16 %v183
    %v204 = vunpack.c.l.b16 %v184
    %v205 = vunpack.c.l.b16 %v185
    %v206 = vunpack.c.l.b16 %v186
    %v207 = vunpack.c.l.b16 %v187
    %v208 = vunpack.c.l.b16 %v188
    %v209 = vpack.c.b16 %v204, %v203
    %v210 = vpack.c.b16 %v206, %v205
    %v211 = vpack.c.b16 %v208, %v207
    %vm215 = vcmask 392192
    %v217 = vsel %vm215, %v190, 0
    %219 = vmatprep.subr.bf16.mxu0 0
    %220 = vmatpush1.bf16.msra.mxu0 %v209
    %221 = vmatprep.subr.bf16.mxu0 0
    %222 = vmatpush1.bf16.msra.mxu0 %v210
    %223 = vmatprep.subr.bf16.mxu0 0
    %224 = vmatpush1.bf16.msra.mxu0 %v211
    %225 = vmatprep.subr.bf16.mxu0 0
    %226 = vmatpush1.bf16.msra.mxu0 0
    %227 = vmatprep.subr.bf16.mxu0 0
    %228 = vmatpush1.bf16.msra.mxu0 0
    %229 = vmatprep.subr.bf16.mxu0 0
    %230 = vmatpush1.bf16.msra.mxu0 0
    %231 = vmatprep.subr.bf16.mxu0 0
    %232 = vmatpush1.bf16.msra.mxu0 0
    %233 = vmatprep.subr.bf16.mxu0 0
    %234 = vmatpush1.bf16.msra.mxu0 0
    %235 = vmatprep.subr.bf16.mxu0 0
    %236 = vmatpush1.bf16.msra.mxu0 0
    %237 = vmatprep.subr.bf16.mxu0 0
    %238 = vmatpush1.bf16.msra.mxu0 0
    %239 = vmatprep.subr.bf16.mxu0 0
    %240 = vmatpush1.bf16.msra.mxu0 0
    %241 = vmatprep.subr.bf16.mxu0 0
    %242 = vmatpush1.bf16.msra.mxu0 0
    %243 = vmatprep.subr.bf16.mxu0 0
    %244 = vmatpush1.bf16.msra.mxu0 0
    %245 = vmatprep.subr.bf16.mxu0 0
    %246 = vmatpush1.bf16.msra.mxu0 0
    %247 = vmatprep.subr.bf16.mxu0 0
    %248 = vmatpush1.bf16.msra.mxu0 0
    %249 = vmatprep.subr.bf16.mxu0 0
    %250 = vmatpush1.bf16.msra.mxu0 0
    %251 = vmatprep.mubr.bf16.mxu0 0
    %252 = vmatmul.mubr.bf16.gmra.mrb[0].mxu0 %v217
    %v253 = vpop.f32.mrb[0].mxu0
    %v254 = vadd.f32 %v195, %v253
    %v255 = vpop.f32.mrb[0].mxu0
    %v256 = vpop.f32.mrb[0].mxu0
    %v257 = vpop.f32.mrb[0].mxu0
    %258 = vdwg.mxu0
    %v259 = vmax.f32 %v254, 0.0
    %vm260 = vcmask 130048
    %261 = vst.msk [vmem:[#allocation2] sm:$0xff] %vm260, %v259
    // Predicated region
    $region30: #{tpu_custom_call.1} parent=1 // pred_check
      _
    $region31: #{tpu_custom_call.1} parent=1 // pred_check_branch
      %263 = sbr.rel (0) target = $region33
    $region32: #{tpu_custom_call.1} parent=1 // pred_region
      %s265 = ssub.s32 128, 128
      %266 = vsyncadd [#allocation3], %s265
      %s268 = sshll.u32 [#allocation2], 4
      %s269 = int_to_ptr.vmem [resolvable:$true] %s268
      %271 = dma.vmem_to_hbm [thread:$0]  %s269, 128, %s7, [#allocation3]
    $region33: #{tpu_custom_call.1} parent=1 // pred_fallthru
      _
    // Predicated region
    $region34: #{tpu_custom_call.1} parent=1 // pred_check
      _
    $region35: #{tpu_custom_call.1} parent=1 // pred_check_branch
      %273 = sbr.rel (0) target = $region37
    $region36: #{tpu_custom_call.1} parent=1 // pred_region
      %274 = dma.done [#allocation3], 128
    $region37: #{tpu_custom_call.1} parent=1 // pred_fallthru
      _
    %275 = vsyncpa [#allocation3], 1

</llo_original>
